<compile_context>
chip_gen: v7x
topology: tpu7x:2x2x1
jax: 0.10.0
libtpu: 0.0.40
codegen_flags: <defaults>
</compile_context>

<pallas_src>
import functools

import jax
import jax.numpy as jnp
from jax import lax
from jax.experimental import pallas as pl
from jax.experimental.pallas import tpu as pltpu


# ---------------------------------------------------------------------------
# Helpers
# ---------------------------------------------------------------------------
def _cdiv(a, b):
    return -(-a // b)


def _round_up(x, m):
    return _cdiv(x, m) * m


def _vmem_capacity_bytes():
    """Per-TensorCore VMEM (v5e/v6e: 128 MiB, v7x: 64 MiB); safe fallback."""
    try:
        info = pltpu.get_tpu_info()
        cap = int(getattr(info, "vmem_capacity_bytes", 0))
        if cap > 0:
            return cap
    except Exception:
        pass
    return 64 << 20


def _plan_k_tiling(nc, hw, itemsize, resident_bytes, max_tk=None):
    """Pick (tk, num_k, rem): largest 128-multiple K tile fitting the budget.

    The streamed feature block is double-buffered by the BlockSpec pipeline,
    so it is charged 2 * nc * tk * itemsize against ~75% of VMEM capacity
    (minus the VMEM-resident target/accumulator).  When the whole contraction
    fits, collapse to a single grid step (tk == hw, exact, no masking).
    `rem` is the number of valid lanes in a ragged last tile (0 = none).
    """
    cap = _vmem_capacity_bytes()
    usable = max(cap * 3 // 4 - resident_bytes, 4 << 20)
    tk_cap = usable // (2 * nc * itemsize)
    tk_cap = max(128, tk_cap // 128 * 128)
    if max_tk is not None:
        tk_cap = min(tk_cap, max(128, max_tk // 128 * 128))
    if hw <= tk_cap:
        return hw, 1, 0                       # whole F resident in one block
    num_k = _cdiv(hw, tk_cap)
    tk = _round_up(_cdiv(hw, num_k), 128)     # even-ish split, minimal tail waste
    num_k = _cdiv(hw, tk)
    rem = hw - (num_k - 1) * tk               # valid lanes in the last tile
    if rem == tk:
        rem = 0
    return tk, num_k, rem


def _vmem_limit_bytes(nc, tk, itemsize, resident_bytes):
    cap = _vmem_capacity_bytes()
    need = 2 * nc * tk * itemsize + resident_bytes + (2 << 20)
    return int(min(max(need, 16 << 20), int(cap * 0.9)))


def _mask_ragged_tail(f, rem):
    """Zero lanes >= rem on the last K step (OOB block lanes are junk)."""
    if not rem:
        return f
    last = pl.program_id(0) == pl.num_programs(0) - 1
    lane = lax.broadcasted_iota(jnp.int32, f.shape, dimension=1)
    keep = jnp.logical_or(jnp.logical_not(last), lane < rem)
    return jnp.where(keep, f, jnp.zeros_like(f))


_GRAM_DNUMS = (((1,), (1,)), ((), ()))  # contract dim 1 of both: F @ F.T


# ---------------------------------------------------------------------------
# Kernels
# ---------------------------------------------------------------------------
def _gram_kernel_single(feat_ref, g_ref, *, inv_denom):
    f = feat_ref[...]
    # TODO(synk): verify in the Mosaic dump that this lowers without a vxpose
    # of the RHS tile at large NC (irrelevant in the mem-bound small-NC case).
    g_ref[...] = lax.dot_general(
        f, f, dimension_numbers=_GRAM_DNUMS,
        preferred_element_type=jnp.float32) * inv_denom


def _gram_kernel_tiled(feat_ref, g_ref, *, inv_denom, rem):
    """K-tiled Gram accumulation; g_ref is VMEM-resident across the K axis."""
    k = pl.program_id(0)

    @pl.when(k == 0)
    def _():
        g_ref[...] = jnp.zeros_like(g_ref)

    f = _mask_ragged_tail(feat_ref[...], rem)
    g_ref[...] += lax.dot_general(
        f, f, dimension_numbers=_GRAM_DNUMS,
        preferred_element_type=jnp.float32)

    @pl.when(k == pl.num_programs(0) - 1)
    def _():
        g_ref[...] = g_ref[...] * inv_denom


def _style_kernel_single(feat_ref, tgt_ref, loss_ref, *, inv_denom, inv_nelems):
    f = feat_ref[...]
    g = lax.dot_general(
        f, f, dimension_numbers=_GRAM_DNUMS,
        preferred_element_type=jnp.float32) * inv_denom
    d = g - tgt_ref[...]
    loss_ref[0, 0] = jnp.sum(d * d) * inv_nelems


def _style_kernel_tiled(feat_ref, tgt_ref, loss_ref, acc_ref, *,
                        inv_denom, inv_nelems, rem):
    """Fused: K-tiled Gram accumulation + MSE vs. the resident target Gram."""
    k = pl.program_id(0)

    @pl.when(k == 0)
    def _():
        acc_ref[...] = jnp.zeros_like(acc_ref)

    f = _mask_ragged_tail(feat_ref[...], rem)
    acc_ref[...] += lax.dot_general(
        f, f, dimension_numbers=_GRAM_DNUMS,
        preferred_element_type=jnp.float32)

    @pl.when(k == pl.num_programs(0) - 1)
    def _():
        g = acc_ref[...] * inv_denom
        d = g - tgt_ref[...]
        loss_ref[0, 0] = jnp.sum(d * d) * inv_nelems


# ---------------------------------------------------------------------------
# Wrappers
# ---------------------------------------------------------------------------
def gram_matrix(x, *, feat_dtype=jnp.bfloat16, max_tk=None):
    """Equivalent of PyTorch gram_matrix(): x is NCHW, result (N*C, N*C) f32."""
    n, c, h, w = x.shape
    nc, hw = n * c, h * w
    inv_denom = 1.0 / float(n * c * h * w)

    feat = x.reshape(nc, hw)
    if feat.dtype != jnp.dtype(feat_dtype):
        feat = feat.astype(feat_dtype)
    itemsize = jnp.dtype(feat.dtype).itemsize

    resident = 2 * nc * nc * 4                      # pipelined output Gram
    tk, num_k, rem = _plan_k_tiling(nc, hw, itemsize, resident, max_tk)

    if num_k == 1:
        kern = functools.partial(_gram_kernel_single, inv_denom=inv_denom)
    else:
        kern = functools.partial(_gram_kernel_tiled, inv_denom=inv_denom, rem=rem)

    return pl.pallas_call(
        kern,
        out_shape=jax.ShapeDtypeStruct((nc, nc), jnp.float32),
        grid=(num_k,),
        in_specs=[pl.BlockSpec((nc, tk), lambda k: (0, k))],
        out_specs=pl.BlockSpec((nc, nc), lambda k: (0, 0)),
        compiler_params=pltpu.CompilerParams(
            dimension_semantics=("arbitrary",),
            vmem_limit_bytes=_vmem_limit_bytes(nc, tk, itemsize, resident),
        ),
        cost_estimate=pl.CostEstimate(
            flops=2 * nc * nc * hw,
            transcendentals=0,
            bytes_accessed=nc * hw * itemsize + nc * nc * 4,
        ),
    )(feat)


def style_loss_forward(x, target_gram, *, feat_dtype=jnp.bfloat16, max_tk=None):
    """StyleLoss.forward: returns (input, loss) with loss = MSE(G(x), target)."""
    n, c, h, w = x.shape
    nc, hw = n * c, h * w
    inv_denom = 1.0 / float(n * c * h * w)
    inv_nelems = 1.0 / float(nc * nc)

    feat = x.reshape(nc, hw)
    if feat.dtype != jnp.dtype(feat_dtype):
        feat = feat.astype(feat_dtype)
    itemsize = jnp.dtype(feat.dtype).itemsize
    tgt = target_gram.astype(jnp.float32)

    resident = 3 * nc * nc * 4                      # pipelined target + f32 acc
    tk, num_k, rem = _plan_k_tiling(nc, hw, itemsize, resident, max_tk)

    if num_k == 1:
        kern = functools.partial(_style_kernel_single,
                                 inv_denom=inv_denom, inv_nelems=inv_nelems)
        scratch = []
    else:
        kern = functools.partial(_style_kernel_tiled, inv_denom=inv_denom,
                                 inv_nelems=inv_nelems, rem=rem)
        scratch = [pltpu.VMEM((nc, nc), jnp.float32)]

    loss = pl.pallas_call(
        kern,
        out_shape=jax.ShapeDtypeStruct((1, 1), jnp.float32),
        grid=(num_k,),
        in_specs=[
            # Feature K-chunks stream through VMEM (double-buffered).
            pl.BlockSpec((nc, tk), lambda k: (0, k)),
            # Target Gram: constant block index -> resident across the K axis.
            pl.BlockSpec((nc, nc), lambda k: (0, 0)),
        ],
        # Scalar loss lives in SMEM (no lane-padded VMEM output tile).
        out_specs=pl.BlockSpec(memory_space=pltpu.MemorySpace.SMEM),
        scratch_shapes=scratch,
        compiler_params=pltpu.CompilerParams(
            dimension_semantics=("arbitrary",),
            vmem_limit_bytes=_vmem_limit_bytes(nc, tk, itemsize, resident),
        ),
        cost_estimate=pl.CostEstimate(
            flops=2 * nc * nc * hw + 3 * nc * nc,
            transcendentals=0,
            bytes_accessed=nc * hw * itemsize + 2 * nc * nc * 4 + 4,
        ),
    )(feat, tgt)
    # forward() returns the input unchanged; loss is the module's side output.
    return x, loss[0, 0]


# ---------------------------------------------------------------------------
# Pure-JAX reference for correctness check
# ---------------------------------------------------------------------------
def _ref_gram(x):
    n, c, h, w = x.shape
    f = x.reshape(n * c, h * w).astype(jnp.float32)
    return (f @ f.T) / (n * c * h * w)


def _ref_forward(x, target_gram):
    g = _ref_gram(x)
    return x, jnp.mean((g - target_gram) ** 2)


# ---------------------------------------------------------------------------
if __name__ == "__main__":
    key = jax.random.PRNGKey(0)
    k_tgt, k_in, k_b1, k_b2 = jax.random.split(key, 4)

    # Small NCHW conv-feature-map shapes consistent with the module.
    target_feature = jax.random.normal(k_tgt, (2, 4, 16, 16), dtype=jnp.float32)
    x = jax.random.normal(k_in, (2, 4, 16, 16), dtype=jnp.float32)

    # __init__: self.target = gram_matrix(target_feature).detach()  (exact f32)
    target_G = jax.block_until_ready(
        gram_matrix(target_feature, feat_dtype=jnp.float32))
    ref_tgt = _ref_gram(target_feature)
    assert jnp.allclose(target_G, ref_tgt, rtol=1e-5, atol=1e-6), "gram mismatch"

    # forward, exact f32 path (single K step at this size).
    out, loss = style_loss_forward(x, target_G, feat_dtype=jnp.float32)
    out = jax.block_until_ready(out)
    loss = jax.block_until_ready(loss)
    ref_out, ref_loss = _ref_forward(x, ref_tgt)
    assert jnp.allclose(out, x), "forward must return its input unchanged"
    assert jnp.allclose(loss, ref_loss, rtol=1e-5, atol=1e-6), (loss, ref_loss)

    # forward, default bf16 streaming path (f32 MXU accumulation): looser tol.
    _, loss_bf16 = style_loss_forward(x, target_G)
    loss_bf16 = jax.block_until_ready(loss_bf16)
    assert jnp.allclose(loss_bf16, ref_loss, rtol=1e-1, atol=1e-5), \
        (loss_bf16, ref_loss)

    # Exercise the K-tiled accumulator + ragged-tail lane masking:
    # HW = 18*18 = 324 with max_tk=128 -> 3 K steps, last tile has 68 lanes.
    xb = jax.random.normal(k_b1, (2, 4, 18, 18), dtype=jnp.float32)
    tb = jax.random.normal(k_b2, (2, 4, 18, 18), dtype=jnp.float32)
    g_tiled = jax.block_until_ready(
        gram_matrix(xb, feat_dtype=jnp.float32, max_tk=128))
    assert jnp.allclose(g_tiled, _ref_gram(xb), rtol=1e-5, atol=1e-6), \
        "tiled gram mismatch"
    tgt_b = _ref_gram(tb)
    _, loss_tiled = style_loss_forward(xb, tgt_b, feat_dtype=jnp.float32,
                                       max_tk=128)
    loss_tiled = jax.block_until_ready(loss_tiled)
    _, ref_loss_tiled = _ref_forward(xb, tgt_b)
    assert jnp.allclose(loss_tiled, ref_loss_tiled, rtol=1e-5, atol=1e-6), \
        (loss_tiled, ref_loss_tiled)

    print("KERNEL_OK")
</pallas_src>

<mosaic_0001>
module attributes {stable_mosaic.version = 11 : i64} {
  func.func @_gram_kernel_single(%arg0: i32, %arg1: memref<8x256xf32, #tpu.memory_space<vmem>>, %arg2: memref<8x8xf32, #tpu.memory_space<vmem>>) attributes {dimension_semantics = [#tpu.dimension_semantics<arbitrary>], iteration_bounds = array<i64: 1>, scalar_prefetch = 0 : i64, scratch_operands = 0 : i64, tpu.core_type = #tpu.core_type<tc>, window_params = [{transform_indices = @transform_0, window_bounds = array<i64: 8, 256>}, {pipeline_mode = #tpu.pipeline_mode<synchronous>, transform_indices = @transform_1, window_bounds = array<i64: 8, 8>}]} {
    %c0 = arith.constant 0 : index
    %c0_0 = arith.constant 0 : index
    %0 = vector.load %arg1[%c0, %c0_0] : memref<8x256xf32, #tpu.memory_space<vmem>>, vector<8x256xf32>
    %cst = arith.constant dense<0.000000e+00> : vector<8x8xf32>
    %1 = tpu.matmul %0, %0, %cst {dimension_numbers = #tpu.dot_dimension_numbers<[1], [1], [0], [0], [0, 0, 1, 0], [], []>} : vector<8x256xf32>, vector<8x256xf32>, vector<8x8xf32> -> vector<8x8xf32>
    %cst_1 = arith.constant 4.8828125E-4 : f32
    %2 = vector.broadcast %cst_1 : f32 to vector<8x8xf32>
    %3 = arith.mulf %1, %2 : vector<8x8xf32>
    %c0_2 = arith.constant 0 : index
    %c0_3 = arith.constant 0 : index
    %4 = vector.load %arg2[%c0_2, %c0_3] : memref<8x8xf32, #tpu.memory_space<vmem>>, vector<8x8xf32>
    tpu.vector_store %arg2[%c0_2, %c0_3], %3 {strides = array<i32>} : memref<8x8xf32, #tpu.memory_space<vmem>>, vector<8x8xf32>,
    return
  }
  func.func @transform_0(%arg0: i32) -> (i32, i32) {
    %c0_i32 = arith.constant 0 : i32
    %c0_i32_0 = arith.constant 0 : i32
    return %c0_i32, %arg0 : i32, i32
  }
  func.func @transform_1(%arg0: i32) -> (i32, i32) {
    %c0_i32 = arith.constant 0 : i32
    %c0_i32_0 = arith.constant 0 : i32
    %c0_i32_1 = arith.constant 0 : i32
    return %c0_i32, %c0_i32_0 : i32, i32
  }
}

</mosaic_0001>

<llo_original>
// kernel: tpu_custom_call.1
$region0: #{tpu_custom_call.1}
  #allocation0 [shape = 'u32[]', space=smem, size = 0x4, offset = 0x4, fixed_abs, tag = 'smem constant byte address 0x4 - core index']
  #allocation1 [shape = 'u32[144,128]{1,0:T(1,128)}', space=vmem, size = 0x12000, scoped, tag = 'internal scratch']
  %s0 = inlined_call_operand.hbm [shape: f32[8,256], index: 0, kind: input, shape index: {}]
  %s1 = inlined_call_operand.hbm [shape: f32[8,8], index: 1, kind: output, shape index: {}]
  %s2 = sld [smem:[#allocation0]]
  $region18: #{tpu_custom_call.1} parent=0
    _
  %s4 = ssub.s32 1, %s2
  %s5 = scalar_select 0, %s4, %s2
  $region1: #{tpu_custom_call.1} parent=0
    #allocation2 [shape = 'u8[8192]{0}', space=vmem, size = 0x2000, scoped, tag = 'input window, operand 0, single buffered']
    #allocation3 [shape = 's32[1]{0}', space=sflag, size = 0x4, scoped, tag = 'scoped memory for tpu_custom_call.1']
    #allocation4 [shape = 's32[1]{0}', space=sflag, size = 0x4, scoped, tag = 'scoped memory for tpu_custom_call.1']
    #allocation5 [shape = 'u8[4096]{0}', space=vmem, size = 0x1000, scoped, tag = 'output window, operand 0, single buffered']
    %6 = vsyncpa [#allocation3], 0
    %7 = vsyncpa [#allocation4], 0
    // Predicated region
    $region2: #{tpu_custom_call.1} parent=1 // pred_check
      _
    $region3: #{tpu_custom_call.1} parent=1 // pred_check_branch
      %9 = sbr.rel (0) target = $region5
    $region4: #{tpu_custom_call.1} parent=1 // pred_region
      %s11 = ssub.s32 256, 256
      %12 = vsyncadd [#allocation3], %s11
      %s14 = sshll.u32 [#allocation2], 4
      %s15 = int_to_ptr.vmem [resolvable:$true] %s14
      %17 = dma.hbm_to_vmem [thread:$0]  %s0, 256, %s15, [#allocation3]
    $region5: #{tpu_custom_call.1} parent=1 // pred_fallthru
      _
    // Predicated region
    $region6: #{tpu_custom_call.1} parent=1 // pred_check
      _
    $region7: #{tpu_custom_call.1} parent=1 // pred_check_branch
      %19 = sbr.rel (0) target = $region9
    $region8: #{tpu_custom_call.1} parent=1 // pred_region
      %20 = dma.done [#allocation3], 256
    $region9: #{tpu_custom_call.1} parent=1 // pred_fallthru
      _
    %v21 = vld [vmem:[#allocation2] sm:$0xff]
    %v22 = vld [vmem:[#allocation2 + $0x8] sm:$0xff]
    %23 = vmatprep.subr.mxu0 %v22
    %24 = vmatpush1.xpose.msra.mxu0 %v21
    %25 = vmatprep.subr.mxu0 0.0
    %26 = vmatpush1.xpose.msra.mxu0 0.0
    %27 = vmatprep.subr.mxu0 0.0
    %28 = vmatpush1.xpose.msra.mxu0 0.0
    %29 = vmatprep.subr.mxu0 0.0
    %30 = vmatpush1.xpose.msra.mxu0 0.0
    %31 = vmatprep.subr.mxu0 0.0
    %32 = vmatpush1.xpose.msra.mxu0 0.0
    %33 = vmatprep.subr.mxu0 0.0
    %34 = vmatpush1.xpose.msra.mxu0 0.0
    %35 = vmatprep.subr.mxu0 0.0
    %36 = vmatpush1.xpose.msra.mxu0 0.0
    %37 = vmatprep.subr.mxu0 0.0
    %38 = vmatpush1.xpose.msra.mxu0 0.0
    %39 = vmatprep.subr.mxu0 0.0
    %40 = vmatpush1.xpose.msra.mxu0 0.0
    %41 = vmatprep.subr.mxu0 0.0
    %42 = vmatpush1.xpose.msra.mxu0 0.0
    %43 = vmatprep.subr.mxu0 0.0
    %44 = vmatpush1.xpose.msra.mxu0 0.0
    %45 = vmatprep.subr.mxu0 0.0
    %46 = vmatpush1.xpose.msra.mxu0 0.0
    %47 = vmatprep.subr.mxu0 0.0
    %48 = vmatpush1.xpose.msra.mxu0 0.0
    %49 = vmatprep.subr.mxu0 0.0
    %50 = vmatpush1.xpose.msra.mxu0 0.0
    %51 = vmatprep.subr.mxu0 0.0
    %52 = vmatpush1.xpose.msra.mxu0 0.0
    %53 = vmatprep.subr.mxu0 0.0
    %54 = vmatpush1.xpose.msra.mxu0 0.0
    %55 = vmatprep.subr.mxu0 0.0
    %56 = vmatpush1.xpose.msra.mxu0 0.0
    %57 = vmatprep.subr.mxu0 0.0
    %58 = vmatpush1.xpose.msra.mxu0 0.0
    %59 = vmatprep.subr.mxu0 0.0
    %60 = vmatpush1.xpose.msra.mxu0 0.0
    %61 = vmatprep.subr.mxu0 0.0
    %62 = vmatpush1.xpose.msra.mxu0 0.0
    %63 = vmatprep.subr.mxu0 0.0
    %64 = vmatpush1.xpose.msra.mxu0 0.0
    %65 = vmatprep.subr.mxu0 0.0
    %66 = vmatpush1.xpose.msra.mxu0 0.0
    %67 = vmatprep.subr.mxu0 0.0
    %68 = vmatpush1.xpose.msra.mxu0 0.0
    %69 = vmatprep.subr.mxu0 0.0
    %70 = vmatpush1.xpose.msra.mxu0 0.0
    %71 = vmatprep.subr.mxu0 0.0
    %72 = vmatpush1.xpose.msra.mxu0 0.0
    %73 = vmatprep.subr.mxu0 0.0
    %74 = vmatpush1.xpose.msra.mxu0 0.0
    %75 = vmatprep.subr.mxu0 0.0
    %76 = vmatpush1.xpose.msra.mxu0 0.0
    %77 = vmatprep.subr.mxu0 0.0
    %78 = vmatpush1.xpose.msra.mxu0 0.0
    %79 = vmatprep.subr.mxu0 0.0
    %80 = vmatpush1.xpose.msra.mxu0 0.0
    %81 = vmatprep.subr.mxu0 0.0
    %82 = vmatpush1.xpose.msra.mxu0 0.0
    %83 = vmatprep.subr.mxu0 0.0
    %84 = vmatpush1.xpose.msra.mxu0 0.0
    %85 = vmatprep.subr.mxu0 0.0
    %86 = vmatpush1.xpose.msra.mxu0 0.0
    %87 = vmatprep.mubr.f32.mxu0 %v22
    %88 = vmatmul.mubr.f32.gmra.mrb[0].mxu0 %v21
    %v89 = vpop.f32.mrb[0].mxu0
    %v90 = vadd.f32 0.0, %v89
    %v91 = vpop.f32.mrb[0].mxu0
    %92 = vdwg.mxu0
    %v93 = vmul.f32 %v90, 0.00048828125
    %vm94 = vcmask 64512
    %95 = vst.msk [vmem:[#allocation5] sm:$0xff] %vm94, %v93
    // Predicated region
    $region10: #{tpu_custom_call.1} parent=1 // pred_check
      _
    $region11: #{tpu_custom_call.1} parent=1 // pred_check_branch
      %97 = sbr.rel (0) target = $region13
    $region12: #{tpu_custom_call.1} parent=1 // pred_region
      %s99 = ssub.s32 128, 128
      %100 = vsyncadd [#allocation4], %s99
      %s102 = sshll.u32 [#allocation5], 4
      %s103 = int_to_ptr.vmem [resolvable:$true] %s102
      %105 = dma.vmem_to_hbm [thread:$0]  %s103, 128, %s1, [#allocation4]
    $region13: #{tpu_custom_call.1} parent=1 // pred_fallthru
      _
    // Predicated region
    $region14: #{tpu_custom_call.1} parent=1 // pred_check
      _
    $region15: #{tpu_custom_call.1} parent=1 // pred_check_branch
      %107 = sbr.rel (0) target = $region17
    $region16: #{tpu_custom_call.1} parent=1 // pred_region
      %108 = dma.done [#allocation4], 128
    $region17: #{tpu_custom_call.1} parent=1 // pred_fallthru
      _
    %109 = vsyncpa [#allocation3], 1
    %110 = vsyncpa [#allocation4], 1

</llo_original>
